<compile_context>
chip_gen: v7x
topology: tpu7x:2x2x1
jax: 0.10.0
libtpu: 0.0.40
codegen_flags: <defaults>
</compile_context>

<pallas_src>
import jax
import jax.numpy as jnp
import numpy as np
from jax.experimental import pallas as pl
from jax.experimental.pallas import tpu as pltpu


def cosine_classifier_kernel(x_ref, p_ref, t_ref, o_ref):
    # x_ref: (TB, 2) VMEM, p_ref: (2, TC) VMEM, t_ref: (1,) SMEM,
    # o_ref: (TB, TC) VMEM
    x = x_ref[...].astype(jnp.float32)          # (TB, 2)
    p = p_ref[...].astype(jnp.float32)          # (2, TC)

    # Static slices keep everything on the VPU (no MXU, no XLU reduce).
    x0 = x[:, 0:1]                              # (TB, 1)
    x1 = x[:, 1:2]                              # (TB, 1)
    p0 = p[0:1, :]                              # (1, TC)
    p1 = p[1:2, :]                              # (1, TC)

    # K=2 contraction as two broadcast multiply-adds -> (TB, TC).
    dots = x0 * p0 + x1 * p1

    eps = jnp.float32(1e-6)
    eps2 = eps * eps
    # Factored epilogue: O(TB + TC) rsqrt/max work instead of O(TB*TC).
    # (max(||x||,eps)*max(||p||,eps) vs torch's max(||x||*||p||,eps): identical
    #  unless a vector norm is below eps.)
    inv_xn = jax.lax.rsqrt(jnp.maximum(x0 * x0 + x1 * x1, eps2))    # (TB, 1)
    inv_pn = jax.lax.rsqrt(jnp.maximum(p0 * p0 + p1 * p1, eps2))    # (1, TC)

    inv_t = jnp.float32(1.0) / t_ref[0]         # one scalar reciprocal
    col_scale = inv_xn * inv_t                  # (TB, 1), cheap

    # Single fused store (keeps v5e's single vst slot unsaturated).
    o_ref[...] = (dots * (col_scale * inv_pn)).astype(o_ref.dtype)


def _round_up(a: int, m: int) -> int:
    return ((a + m - 1) // m) * m


def _choose_class_tile(C: int, max_tc: int = 2048) -> int:
    """Lane-dense multiple-of-128 divisor of C when possible, else full extent."""
    if C % 128 == 0 and C > max_tc:
        for cand in range(max_tc, 0, -128):
            if C % cand == 0:
                return cand
    return C  # full-extent block: no class padding, no post-kernel slice


def cosine_classifier(x, points, temperature, *, out_dtype=jnp.float32):
    """x: (B, 2) f32, points: (C, 2) f32, temperature: (1,) f32 -> (B, C)."""
    B, D = x.shape
    assert D == 2
    C = points.shape[0]

    # --- class tile ---
    tc = _choose_class_tile(C)

    # --- batch tile from a VMEM budget (double-buffered output dominates) ---
    out_buf_budget = 8 * 1024 * 1024            # bytes per output buffer
    bytes_per_row = tc * jnp.dtype(out_dtype).itemsize
    tb = max(8, (out_buf_budget // bytes_per_row) // 8 * 8)

    B8 = _round_up(B, 8)
    # Keep >= 2 batch grid steps where possible (v7x has 2 TensorCores).
    if B8 >= 16:
        tb = min(tb, max(8, (B8 // 2) // 8 * 8))
    tb = min(tb, B8)

    B_pad = _round_up(B, tb)
    x_p = x.astype(jnp.float32)
    if B_pad != B:
        x_p = jnp.pad(x_p, ((0, B_pad - B), (0, 0)))

    # Pre-transpose points once in the wrapper: (C, 2) -> (2, C). No padding.
    p_t = points.astype(jnp.float32).T
    t = temperature.astype(jnp.float32).reshape((1,))

    grid = (B_pad // tb, C // tc)

    # Estimated double-buffered VMEM footprint; keep scoped limit comfortably
    # above it but within every generation's physical VMEM (v7x: 64 MiB/TC).
    vmem_limit = 40 * 1024 * 1024

    out = pl.pallas_call(
        cosine_classifier_kernel,
        out_shape=jax.ShapeDtypeStruct((B_pad, C), out_dtype),
        grid_spec=pltpu.PrefetchScalarGridSpec(
            num_scalar_prefetch=0,
            grid=grid,
            in_specs=[
                pl.BlockSpec((tb, 2), lambda i, j: (i, 0)),     # x tile (resident over j)
                pl.BlockSpec((2, tc), lambda i, j: (0, j)),     # points tile
                pl.BlockSpec(memory_space=pltpu.MemorySpace.SMEM),  # temperature
            ],
            out_specs=pl.BlockSpec((tb, tc), lambda i, j: (i, j)),
        ),
        compiler_params=pltpu.CompilerParams(
            dimension_semantics=("parallel", "parallel"),
            vmem_limit_bytes=vmem_limit,
        ),
    )(x_p, p_t, t)

    # No class slicing (output is unpadded along C); slice batch only if we
    # actually padded it.
    if B_pad != B:
        out = out[:B]
    return out


def make_params(n_classes: int, key):
    # torch.nn.Parameter(torch.rand(1)) -> deterministic uniform init here
    temperature = jax.random.uniform(key, (1,), dtype=jnp.float32)
    # thetas = arange(0, 2*pi, 2*pi/n_classes)
    thetas = (2.0 * np.pi / n_classes) * jnp.arange(n_classes, dtype=jnp.float32)
    points = jnp.stack([jnp.cos(thetas), jnp.sin(thetas)], axis=1)  # (C, 2)
    return points, temperature


def reference(x, points, temperature):
    # pure-JAX reference replicating torch.nn.CosineSimilarity(dim=-1, eps=1e-6)
    eps = 1e-6
    dots = x @ points.T
    xn = jnp.sqrt(jnp.sum(x * x, axis=-1, keepdims=True))
    pn = jnp.sqrt(jnp.sum(points * points, axis=-1))[None, :]
    cos = dots / jnp.maximum(xn * pn, eps)
    return cos / temperature[0]


if __name__ == "__main__":
    n_classes = 12
    batch = 8

    key = jax.random.PRNGKey(0)
    k_temp, k_x = jax.random.split(key)

    points, temperature = make_params(n_classes, k_temp)
    x = jax.random.normal(k_x, (batch, 2), dtype=jnp.float32)

    logits = cosine_classifier(x, points, temperature)
    logits = jax.block_until_ready(logits)

    ref = reference(x, points, temperature)
    assert logits.shape == (batch, n_classes)
    np.testing.assert_allclose(np.asarray(logits), np.asarray(ref),
                               rtol=1e-5, atol=1e-5)

    print("KERNEL_OK")
</pallas_src>

<mosaic_0001>
module attributes {stable_mosaic.version = 11 : i64} {
  func.func @cosine_classifier_kernel(%arg0: i32, %arg1: i32, %arg2: memref<8x2xf32, #tpu.memory_space<vmem>>, %arg3: memref<2x12xf32, #tpu.memory_space<vmem>>, %arg4: memref<1xf32, #tpu.memory_space<smem>>, %arg5: memref<8x12xf32, #tpu.memory_space<vmem>>) attributes {dimension_semantics = [#tpu.dimension_semantics<parallel>, #tpu.dimension_semantics<parallel>], iteration_bounds = array<i64: 1, 1>, scalar_prefetch = 0 : i64, scratch_operands = 0 : i64, tpu.core_type = #tpu.core_type<tc>, window_params = [{transform_indices = @transform_0, window_bounds = array<i64: 8, 2>}, {transform_indices = @transform_1, window_bounds = array<i64: 2, 12>}, {transform_indices = @transform_2, window_bounds = array<i64: 1>}, {transform_indices = @transform_3, window_bounds = array<i64: 8, 12>}]} {
    %c0 = arith.constant 0 : index
    %c0_0 = arith.constant 0 : index
    %0 = vector.load %arg2[%c0, %c0_0] : memref<8x2xf32, #tpu.memory_space<vmem>>, vector<8x2xf32>
    %c0_1 = arith.constant 0 : index
    %c0_2 = arith.constant 0 : index
    %1 = vector.load %arg3[%c0_1, %c0_2] : memref<2x12xf32, #tpu.memory_space<vmem>>, vector<2x12xf32>
    %2 = vector.extract_strided_slice %0 {offsets = [0, 0], sizes = [8, 1], strides = [1, 1]} : vector<8x2xf32> to vector<8x1xf32>
    %3 = vector.extract_strided_slice %0 {offsets = [0, 1], sizes = [8, 1], strides = [1, 1]} : vector<8x2xf32> to vector<8x1xf32>
    %4 = vector.extract_strided_slice %1 {offsets = [0, 0], sizes = [1, 12], strides = [1, 1]} : vector<2x12xf32> to vector<1x12xf32>
    %5 = vector.extract_strided_slice %1 {offsets = [1, 0], sizes = [1, 12], strides = [1, 1]} : vector<2x12xf32> to vector<1x12xf32>
    %6 = vector.broadcast %2 : vector<8x1xf32> to vector<8x12xf32>
    %7 = vector.broadcast %4 : vector<1x12xf32> to vector<8x12xf32>
    %8 = arith.mulf %6, %7 : vector<8x12xf32>
    %9 = vector.broadcast %3 : vector<8x1xf32> to vector<8x12xf32>
    %10 = vector.broadcast %5 : vector<1x12xf32> to vector<8x12xf32>
    %11 = arith.mulf %9, %10 : vector<8x12xf32>
    %12 = arith.addf %8, %11 : vector<8x12xf32>
    %cst = arith.constant 9.99999997E-7 : f32
    %cst_3 = arith.constant 9.99999997E-7 : f32
    %13 = arith.mulf %cst, %cst_3 : f32
    %14 = arith.mulf %2, %2 : vector<8x1xf32>
    %15 = arith.mulf %3, %3 : vector<8x1xf32>
    %16 = arith.addf %14, %15 : vector<8x1xf32>
    %17 = vector.broadcast %13 : f32 to vector<8x1xf32>
    %18 = arith.maximumf %16, %17 : vector<8x1xf32>
    %19 = math.rsqrt %18 : vector<8x1xf32>
    %20 = arith.mulf %4, %4 : vector<1x12xf32>
    %21 = arith.mulf %5, %5 : vector<1x12xf32>
    %22 = arith.addf %20, %21 : vector<1x12xf32>
    %23 = vector.broadcast %13 : f32 to vector<1x12xf32>
    %24 = arith.maximumf %22, %23 : vector<1x12xf32>
    %25 = math.rsqrt %24 : vector<1x12xf32>
    %c0_4 = arith.constant 0 : index
    %26 = memref.load %arg4[%c0_4] : memref<1xf32, #tpu.memory_space<smem>>
    %cst_5 = arith.constant 1.000000e+00 : f32
    %27 = arith.divf %cst_5, %26 : f32
    %28 = vector.broadcast %27 : f32 to vector<8x1xf32>
    %29 = arith.mulf %19, %28 : vector<8x1xf32>
    %30 = vector.broadcast %29 : vector<8x1xf32> to vector<8x12xf32>
    %31 = vector.broadcast %25 : vector<1x12xf32> to vector<8x12xf32>
    %32 = arith.mulf %30, %31 : vector<8x12xf32>
    %33 = arith.mulf %12, %32 : vector<8x12xf32>
    %c0_6 = arith.constant 0 : index
    %c0_7 = arith.constant 0 : index
    %34 = vector.load %arg5[%c0_6, %c0_7] : memref<8x12xf32, #tpu.memory_space<vmem>>, vector<8x12xf32>
    tpu.vector_store %arg5[%c0_6, %c0_7], %33 {strides = array<i32>} : memref<8x12xf32, #tpu.memory_space<vmem>>, vector<8x12xf32>,
    return
  }
  func.func @transform_0(%arg0: i32, %arg1: i32) -> (i32, i32) {
    %c0_i32 = arith.constant 0 : i32
    %c0_i32_0 = arith.constant 0 : i32
    return %arg0, %c0_i32 : i32, i32
  }
  func.func @transform_1(%arg0: i32, %arg1: i32) -> (i32, i32) {
    %c0_i32 = arith.constant 0 : i32
    %c0_i32_0 = arith.constant 0 : i32
    return %c0_i32, %arg1 : i32, i32
  }
  func.func @transform_2(%arg0: i32, %arg1: i32) -> i32 {
    %c0_i32 = arith.constant 0 : i32
    %c0_i32_0 = arith.constant 0 : i32
    return %c0_i32 : i32
  }
  func.func @transform_3(%arg0: i32, %arg1: i32) -> (i32, i32) {
    %c0_i32 = arith.constant 0 : i32
    return %arg0, %arg1 : i32, i32
  }
}

</mosaic_0001>

<llo_original>
// kernel: tpu_custom_call.1
$region0: #{tpu_custom_call.1}
  #allocation0 [shape = 'u32[]', space=smem, size = 0x4, offset = 0x4, fixed_abs, tag = 'smem constant byte address 0x4 - core index']
  #allocation1 [shape = 'u32[144,128]{1,0:T(1,128)}', space=vmem, size = 0x12000, scoped, tag = 'internal scratch']
  #allocation2 [shape = 'f32[1]{0:T(128)S(6)}', space=smem, size = 0x200, scoped, tag = 'scoped memory for tpu_custom_call.1']
  %s0 = inlined_call_operand.vmem [shape: f32[8,2], index: 0, kind: input, shape index: {}]
  %s1 = inlined_call_operand.vmem [shape: f32[2,12], index: 1, kind: input, shape index: {}]
  %s2 = inlined_call_operand.<no memory space> [shape: f32[1], index: 2, kind: input, shape index: {}]
  %s3 = inlined_call_operand.hbm [shape: f32[8,12], index: 3, kind: output, shape index: {}]
  %s4 = sld [smem:[#allocation0]]
  $region22: #{tpu_custom_call.1} parent=0
    _
  %s6 = ssub.s32 1, %s4
  %s7 = scalar_select 0, %s6, %s4
  %8 = sst [smem:[#allocation2]] %s2
  $region1: #{tpu_custom_call.1} parent=0
    #allocation3 [shape = 'u8[4096]{0}', space=vmem, size = 0x1000, scoped, tag = 'output window, operand 0, single buffered']
    #allocation4 [shape = 's32[1]{0}', space=sflag, size = 0x4, scoped, tag = 'scoped memory for tpu_custom_call.1']
    %9 = vsyncpa [#allocation4], 0
    // Predicated region
    $region2: #{tpu_custom_call.1} parent=1 // pred_check
      _
    $region3: #{tpu_custom_call.1} parent=1 // pred_check_branch
      %11 = sbr.rel (0) target = $region5
    $region4: #{tpu_custom_call.1} parent=1 // pred_region
      _
    $region5: #{tpu_custom_call.1} parent=1 // pred_fallthru
      _
    // Predicated region
    $region6: #{tpu_custom_call.1} parent=1 // pred_check
      _
    $region7: #{tpu_custom_call.1} parent=1 // pred_check_branch
      %13 = sbr.rel (0) target = $region9
    $region8: #{tpu_custom_call.1} parent=1 // pred_region
      _
    $region9: #{tpu_custom_call.1} parent=1 // pred_fallthru
      _
    // Predicated region
    $region10: #{tpu_custom_call.1} parent=1 // pred_check
      _
    $region11: #{tpu_custom_call.1} parent=1 // pred_check_branch
      %15 = sbr.rel (0) target = $region13
    $region12: #{tpu_custom_call.1} parent=1 // pred_region
      _
    $region13: #{tpu_custom_call.1} parent=1 // pred_fallthru
      _
    %v16 = vld [vmem:[%s0] sm:$0xff]
    %v17 = vld [vmem:[%s1] sm:$0x3]
    %19 = vset.pattern.permute.xlu0 0
    %20 = vperm.xlu0 %19, %v16
    %v21 = vpop.permute.xlu0 %20
    %v23 = vlaneseq
    %v24 = vshrl.u32 %v23, 7
    %v25 = vsub.s32 0, %v24
    %v26 = vrot.slane %v17, %v25
    %v27 = vmul.f32 %v21, %v26
    %28 = vset.pattern.permute.xlu0 1
    %29 = vperm.xlu0 %28, %v16
    %v30 = vpop.permute.xlu0 %29
    %v32 = vlaneseq
    %v33 = vshrl.u32 %v32, 7
    %v34 = vsub.s32 1, %v33
    %v35 = vrot.slane %v17, %v34
    %v36 = vmul.f32 %v30, %v35
    %v37 = vadd.f32 %v27, %v36
    %v38 = vmul.f32 %v16, %v16
    %40 = vrot.lane.b32.xlu0 %v38, 127
    %v41 = vpop.permute.xlu0 %40
    %v43 = vadd.f32 %v38, %v41
    %v44 = vmax.f32 %v43, 1e-12
    %v45 = vrsqrt.pop %v44
    %v46 = vmul.f32 %v17, %v17
    %v48 = vrot.slane %v46, 1
    %v50 = vadd.f32 %v46, %v48
    %v51 = vmax.f32 %v50, 1e-12
    %v52 = vrsqrt.pop %v51
    %s53 = sld [smem:[#allocation2]]
    %v54 = vstv %s53
    %v55 = vrcp.pop %v54
    %s56 = vtos %v55
    %v57 = vstv %s56
    %v58 = vmul.f32 %v45, %v57
    %60 = vset.pattern.permute.xlu0 0
    %61 = vperm.xlu0 %60, %v58
    %v62 = vpop.permute.xlu0 %61
    %v64 = vlaneseq
    %v65 = vshrl.u32 %v64, 7
    %v66 = vsub.s32 0, %v65
    %v67 = vrot.slane %v52, %v66
    %v68 = vmul.f32 %v62, %v67
    %v69 = vmul.f32 %v37, %v68
    %vm70 = vcmask 97280
    %71 = vst.msk [vmem:[#allocation3] sm:$0xff] %vm70, %v69
    // Predicated region
    $region14: #{tpu_custom_call.1} parent=1 // pred_check
      _
    $region15: #{tpu_custom_call.1} parent=1 // pred_check_branch
      %73 = sbr.rel (0) target = $region17
    $region16: #{tpu_custom_call.1} parent=1 // pred_region
      %s75 = ssub.s32 128, 128
      %76 = vsyncadd [#allocation4], %s75
      %s78 = sshll.u32 [#allocation3], 4
      %s79 = int_to_ptr.vmem [resolvable:$true] %s78
      %81 = dma.vmem_to_hbm [thread:$0]  %s79, 128, %s3, [#allocation4]
    $region17: #{tpu_custom_call.1} parent=1 // pred_fallthru
      _
    // Predicated region
    $region18: #{tpu_custom_call.1} parent=1 // pred_check
      _
    $region19: #{tpu_custom_call.1} parent=1 // pred_check_branch
      %83 = sbr.rel (0) target = $region21
    $region20: #{tpu_custom_call.1} parent=1 // pred_region
      %84 = dma.done [#allocation4], 128
    $region21: #{tpu_custom_call.1} parent=1 // pred_fallthru
      _
    %85 = vsyncpa [#allocation4], 1

</llo_original>
